<compile_context>
chip_gen: v5e
topology: v5e:2x2
jax: 0.10.0
libtpu: 0.0.40
codegen_flags: <defaults>
</compile_context>

<pallas_src>
import functools

import jax
import jax.numpy as jnp
from jax.experimental import pallas as pl
from jax.experimental.pallas import tpu as pltpu

EPS = 1e-5
LANE = 128


def _round_up(v, m):
    return (v + m - 1) // m * m


def _pad2(a, rows, cols):
    return jnp.pad(a, ((0, rows - a.shape[0]), (0, cols - a.shape[1])))


def _bn_relu(h, gamma, beta, inv_n):
    """Training-mode BatchNorm1d (batch mean, biased batch var) + ReLU, f32.

    Single-pass statistics: var = E[h^2] - mean^2.  Normalization fused into
    one multiply-add per element.  Padded columns have gamma=beta=0 so they
    stay exactly 0 (scale=0 kills the rsqrt(eps) blow-up).
    """
    s = jnp.sum(h, axis=0, keepdims=True)
    ss = jnp.sum(h * h, axis=0, keepdims=True)
    mean = s * inv_n
    var = ss * inv_n - mean * mean
    scale = gamma * jax.lax.rsqrt(var + EPS)
    shift = beta - mean * scale
    return jnp.maximum(h * scale + shift, 0.0)


def mlp_kernel(x_ref,
               w1_ref, g1_ref, be1_ref,
               w2_ref, g2_ref, be2_ref,
               w3_ref, b3_ref,
               out_ref):
    inv_n = 1.0 / x_ref.shape[0]              # static batch size

    # bf16 operands into the MXU, f32 accumulation; BN/ReLU epilogue in f32.
    x = x_ref[...].astype(jnp.bfloat16)       # (N, 32) f32 -> bf16 in-kernel

    # Pre-BN biases are mathematically absorbed by the mean subtraction.
    h1 = jnp.dot(x, w1_ref[...], preferred_element_type=jnp.float32)
    h1 = _bn_relu(h1, g1_ref[...], be1_ref[...], inv_n)          # f32

    h2 = jnp.dot(h1.astype(jnp.bfloat16), w2_ref[...],
                 preferred_element_type=jnp.float32)
    h2 = _bn_relu(h2, g2_ref[...], be2_ref[...], inv_n)          # f32

    out = jnp.dot(h2.astype(jnp.bfloat16), w3_ref[...],
                  preferred_element_type=jnp.float32) + b3_ref[...]
    # Lane-dense (N, 128*k) store -> unmasked vst.
    out_ref[...] = out.astype(out_ref.dtype)


def prepare_params(params):
    """One-time padding to lane multiples + bf16 cast of the matmul weights.

    Zero padding is exact: padded hidden columns stay identically 0 through
    Linear + BN + ReLU and hit zero weight rows in the next layer; padded
    output columns are sliced off after the kernel.
    """
    f_in = params["w1"].shape[0]
    h1 = params["w1"].shape[1]
    h2 = params["w2"].shape[1]
    nc = params["w3"].shape[1]

    h1_p = _round_up(h1, LANE)
    h2_p = _round_up(h2, LANE)
    nc_p = _round_up(nc, LANE)

    return {
        # w1 keeps its true K (=in_features); only the output dim is padded.
        "w1": _pad2(params["w1"], f_in, h1_p).astype(jnp.bfloat16),
        "g1": _pad2(params["g1"], 1, h1_p),
        "be1": _pad2(params["be1"], 1, h1_p),
        "w2": _pad2(params["w2"], h1_p, h2_p).astype(jnp.bfloat16),
        "g2": _pad2(params["g2"], 1, h2_p),
        "be2": _pad2(params["be2"], 1, h2_p),
        "w3": _pad2(params["w3"], h2_p, nc_p).astype(jnp.bfloat16),
        "b3": _pad2(params["b3"], 1, nc_p),
    }


@functools.partial(jax.jit, static_argnames="num_classes")
def mlp_forward(x, prep, num_classes):
    """x: (N, in_features) f32 (unpadded). prep: output of prepare_params."""
    n = x.shape[0]
    nc_p = prep["w3"].shape[1]

    args = (x,
            prep["w1"], prep["g1"], prep["be1"],
            prep["w2"], prep["g2"], prep["be2"],
            prep["w3"], prep["b3"])

    # Single grid point: whole batch + all (padded) weights are < 1 MiB of
    # VMEM, and one batch block keeps BatchNorm's batch statistics exact.
    def full_spec(a):
        nd = a.ndim
        return pl.BlockSpec(a.shape, lambda *_: (0,) * nd)

    out_p = pl.pallas_call(
        mlp_kernel,
        out_shape=jax.ShapeDtypeStruct((n, nc_p), jnp.float32),
        grid=(),
        in_specs=[full_spec(a) for a in args],
        out_specs=pl.BlockSpec((n, nc_p), lambda *_: (0, 0)),
        compiler_params=pltpu.CompilerParams(vmem_limit_bytes=32 * 1024 * 1024),
    )(*args)

    # Fused under the same jit (no separate eagerly-dispatched slice kernel).
    return out_p[:, :num_classes]


def init_params(key, in_features, hidden_layers, num_classes):
    """Deterministic synthetic parameters. Linear weights stored as (in, out)
    (i.e. already transposed relative to PyTorch's (out, in))."""
    dims = [in_features] + list(hidden_layers)
    keys = jax.random.split(key, 2 * len(hidden_layers) + 2)
    p = {}
    ki = 0
    for li, (din, dout) in enumerate(zip(dims[:-1], dims[1:]), start=1):
        scale = 1.0 / jnp.sqrt(din)
        p[f"w{li}"] = jax.random.uniform(keys[ki], (din, dout), jnp.float32,
                                         -scale, scale); ki += 1
        p[f"b{li}"] = jax.random.uniform(keys[ki], (1, dout), jnp.float32,
                                         -scale, scale); ki += 1
        # BatchNorm affine params (PyTorch init: gamma=1, beta=0)
        p[f"g{li}"] = jnp.ones((1, dout), jnp.float32)
        p[f"be{li}"] = jnp.zeros((1, dout), jnp.float32)
    din, dout = dims[-1], num_classes
    scale = 1.0 / jnp.sqrt(din)
    li = len(hidden_layers) + 1
    p[f"w{li}"] = jax.random.uniform(keys[ki], (din, dout), jnp.float32,
                                     -scale, scale); ki += 1
    p[f"b{li}"] = jax.random.uniform(keys[ki], (1, dout), jnp.float32,
                                     -scale, scale); ki += 1
    return p


def mlp_reference(x, params):
    """Pure-JAX reference with the original module semantics (pre-BN biases
    INCLUDED — the kernel's bias drop is exact up to f32 rounding): bf16
    matmul operands, f32 accumulation, training-mode BN, ReLU."""
    def bdot(a, w):
        return jnp.dot(a.astype(jnp.bfloat16), w.astype(jnp.bfloat16),
                       preferred_element_type=jnp.float32)

    def bn_relu(h, gamma, beta):
        mean = jnp.mean(h, axis=0, keepdims=True)
        var = jnp.mean(jnp.square(h - mean), axis=0, keepdims=True)
        scale = gamma * jax.lax.rsqrt(var + EPS)
        return jnp.maximum(h * scale + (beta - mean * scale), 0.0)

    h = bdot(x, params["w1"]) + params["b1"]
    h = bn_relu(h, params["g1"], params["be1"])
    h = bdot(h, params["w2"]) + params["b2"]
    h = bn_relu(h, params["g2"], params["be2"])
    return bdot(h, params["w3"]) + params["b3"]


if __name__ == "__main__":
    key = jax.random.PRNGKey(0)
    kx, kp = jax.random.split(key)

    # Small but MXU-sublane-friendly batch; module-consistent feature dims.
    N, IN_FEATURES = 128, 32
    HIDDEN = [64, 32]
    NUM_CLASSES = 10

    x = jax.random.normal(kx, (N, IN_FEATURES), jnp.float32)
    params = init_params(kp, IN_FEATURES, HIDDEN, NUM_CLASSES)

    # Padding / bf16 cast happens once, outside the per-call path.
    prep = prepare_params(params)
    prep = jax.tree_util.tree_map(jax.block_until_ready, prep)

    out = mlp_forward(x, prep, NUM_CLASSES)
    out = jax.block_until_ready(out)

    ref = mlp_reference(x, params)
    assert out.shape == (N, NUM_CLASSES)
    assert jnp.allclose(out, ref, atol=5e-3, rtol=5e-3), "mismatch vs reference"

    print("KERNEL_OK")
</pallas_src>

<mosaic_0001>
module attributes {stable_mosaic.version = 11 : i64} {
  func.func @mlp_kernel(%arg0: memref<128x32xf32, #tpu.memory_space<vmem>>, %arg1: memref<32x128xbf16, #tpu.memory_space<vmem>>, %arg2: memref<1x128xf32, #tpu.memory_space<vmem>>, %arg3: memref<1x128xf32, #tpu.memory_space<vmem>>, %arg4: memref<128x128xbf16, #tpu.memory_space<vmem>>, %arg5: memref<1x128xf32, #tpu.memory_space<vmem>>, %arg6: memref<1x128xf32, #tpu.memory_space<vmem>>, %arg7: memref<128x128xbf16, #tpu.memory_space<vmem>>, %arg8: memref<1x128xf32, #tpu.memory_space<vmem>>, %arg9: memref<128x128xf32, #tpu.memory_space<vmem>>) attributes {dimension_semantics = [], scalar_prefetch = 0 : i64, scratch_operands = 0 : i64, tpu.core_type = #tpu.core_type<tc>} {
    %c0 = arith.constant 0 : index
    %c0_0 = arith.constant 0 : index
    %0 = vector.load %arg0[%c0, %c0_0] : memref<128x32xf32, #tpu.memory_space<vmem>>, vector<128x32xf32>
    %1 = arith.truncf %0 : vector<128x32xf32> to vector<128x32xbf16>
    %c0_1 = arith.constant 0 : index
    %c0_2 = arith.constant 0 : index
    %2 = vector.load %arg1[%c0_1, %c0_2] : memref<32x128xbf16, #tpu.memory_space<vmem>>, vector<32x128xbf16>
    %cst = arith.constant dense<0.000000e+00> : vector<128x128xf32>
    %3 = tpu.matmul %1, %2, %cst {dimension_numbers = #tpu.dot_dimension_numbers<[1], [0], [0], [1], [0, 0, 1, 1], [], []>} : vector<128x32xbf16>, vector<32x128xbf16>, vector<128x128xf32> -> vector<128x128xf32>
    %c0_3 = arith.constant 0 : index
    %c0_4 = arith.constant 0 : index
    %4 = vector.load %arg2[%c0_3, %c0_4] : memref<1x128xf32, #tpu.memory_space<vmem>>, vector<1x128xf32>
    %c0_5 = arith.constant 0 : index
    %c0_6 = arith.constant 0 : index
    %5 = vector.load %arg3[%c0_5, %c0_6] : memref<1x128xf32, #tpu.memory_space<vmem>>, vector<1x128xf32>
    %cst_7 = arith.constant dense<0.000000e+00> : vector<128xf32>
    %6 = vector.multi_reduction <add>, %3, %cst_7 [0] : vector<128x128xf32> to vector<128xf32>
    %7 = vector.shape_cast %6 : vector<128xf32> to vector<1x128xf32>
    %8 = arith.mulf %3, %3 : vector<128x128xf32>
    %cst_8 = arith.constant dense<0.000000e+00> : vector<128xf32>
    %9 = vector.multi_reduction <add>, %8, %cst_8 [0] : vector<128x128xf32> to vector<128xf32>
    %10 = vector.shape_cast %9 : vector<128xf32> to vector<1x128xf32>
    %cst_9 = arith.constant 7.812500e-03 : f32
    %11 = vector.broadcast %cst_9 : f32 to vector<1x128xf32>
    %12 = arith.mulf %7, %11 : vector<1x128xf32>
    %cst_10 = arith.constant 7.812500e-03 : f32
    %13 = vector.broadcast %cst_10 : f32 to vector<1x128xf32>
    %14 = arith.mulf %10, %13 : vector<1x128xf32>
    %15 = arith.mulf %12, %12 : vector<1x128xf32>
    %16 = arith.subf %14, %15 : vector<1x128xf32>
    %cst_11 = arith.constant 9.99999974E-6 : f32
    %17 = vector.broadcast %cst_11 : f32 to vector<1x128xf32>
    %18 = arith.addf %16, %17 : vector<1x128xf32>
    %19 = math.rsqrt %18 : vector<1x128xf32>
    %20 = arith.mulf %4, %19 : vector<1x128xf32>
    %21 = arith.mulf %12, %20 : vector<1x128xf32>
    %22 = arith.subf %5, %21 : vector<1x128xf32>
    %23 = vector.broadcast %20 : vector<1x128xf32> to vector<128x128xf32>
    %24 = arith.mulf %3, %23 : vector<128x128xf32>
    %25 = vector.broadcast %22 : vector<1x128xf32> to vector<128x128xf32>
    %26 = arith.addf %24, %25 : vector<128x128xf32>
    %cst_12 = arith.constant 0.000000e+00 : f32
    %27 = vector.broadcast %cst_12 : f32 to vector<128x128xf32>
    %28 = arith.maximumf %26, %27 : vector<128x128xf32>
    %29 = arith.truncf %28 : vector<128x128xf32> to vector<128x128xbf16>
    %c0_13 = arith.constant 0 : index
    %c0_14 = arith.constant 0 : index
    %30 = vector.load %arg4[%c0_13, %c0_14] : memref<128x128xbf16, #tpu.memory_space<vmem>>, vector<128x128xbf16>
    %cst_15 = arith.constant dense<0.000000e+00> : vector<128x128xf32>
    %31 = tpu.matmul %29, %30, %cst_15 {dimension_numbers = #tpu.dot_dimension_numbers<[1], [0], [0], [1], [0, 0, 1, 1], [], []>} : vector<128x128xbf16>, vector<128x128xbf16>, vector<128x128xf32> -> vector<128x128xf32>
    %c0_16 = arith.constant 0 : index
    %c0_17 = arith.constant 0 : index
    %32 = vector.load %arg5[%c0_16, %c0_17] : memref<1x128xf32, #tpu.memory_space<vmem>>, vector<1x128xf32>
    %c0_18 = arith.constant 0 : index
    %c0_19 = arith.constant 0 : index
    %33 = vector.load %arg6[%c0_18, %c0_19] : memref<1x128xf32, #tpu.memory_space<vmem>>, vector<1x128xf32>
    %cst_20 = arith.constant dense<0.000000e+00> : vector<128xf32>
    %34 = vector.multi_reduction <add>, %31, %cst_20 [0] : vector<128x128xf32> to vector<128xf32>
    %35 = vector.shape_cast %34 : vector<128xf32> to vector<1x128xf32>
    %36 = arith.mulf %31, %31 : vector<128x128xf32>
    %cst_21 = arith.constant dense<0.000000e+00> : vector<128xf32>
    %37 = vector.multi_reduction <add>, %36, %cst_21 [0] : vector<128x128xf32> to vector<128xf32>
    %38 = vector.shape_cast %37 : vector<128xf32> to vector<1x128xf32>
    %cst_22 = arith.constant 7.812500e-03 : f32
    %39 = vector.broadcast %cst_22 : f32 to vector<1x128xf32>
    %40 = arith.mulf %35, %39 : vector<1x128xf32>
    %cst_23 = arith.constant 7.812500e-03 : f32
    %41 = vector.broadcast %cst_23 : f32 to vector<1x128xf32>
    %42 = arith.mulf %38, %41 : vector<1x128xf32>
    %43 = arith.mulf %40, %40 : vector<1x128xf32>
    %44 = arith.subf %42, %43 : vector<1x128xf32>
    %cst_24 = arith.constant 9.99999974E-6 : f32
    %45 = vector.broadcast %cst_24 : f32 to vector<1x128xf32>
    %46 = arith.addf %44, %45 : vector<1x128xf32>
    %47 = math.rsqrt %46 : vector<1x128xf32>
    %48 = arith.mulf %32, %47 : vector<1x128xf32>
    %49 = arith.mulf %40, %48 : vector<1x128xf32>
    %50 = arith.subf %33, %49 : vector<1x128xf32>
    %51 = vector.broadcast %48 : vector<1x128xf32> to vector<128x128xf32>
    %52 = arith.mulf %31, %51 : vector<128x128xf32>
    %53 = vector.broadcast %50 : vector<1x128xf32> to vector<128x128xf32>
    %54 = arith.addf %52, %53 : vector<128x128xf32>
    %cst_25 = arith.constant 0.000000e+00 : f32
    %55 = vector.broadcast %cst_25 : f32 to vector<128x128xf32>
    %56 = arith.maximumf %54, %55 : vector<128x128xf32>
    %57 = arith.truncf %56 : vector<128x128xf32> to vector<128x128xbf16>
    %c0_26 = arith.constant 0 : index
    %c0_27 = arith.constant 0 : index
    %58 = vector.load %arg7[%c0_26, %c0_27] : memref<128x128xbf16, #tpu.memory_space<vmem>>, vector<128x128xbf16>
    %cst_28 = arith.constant dense<0.000000e+00> : vector<128x128xf32>
    %59 = tpu.matmul %57, %58, %cst_28 {dimension_numbers = #tpu.dot_dimension_numbers<[1], [0], [0], [1], [0, 0, 1, 1], [], []>} : vector<128x128xbf16>, vector<128x128xbf16>, vector<128x128xf32> -> vector<128x128xf32>
    %c0_29 = arith.constant 0 : index
    %c0_30 = arith.constant 0 : index
    %60 = vector.load %arg8[%c0_29, %c0_30] : memref<1x128xf32, #tpu.memory_space<vmem>>, vector<1x128xf32>
    %61 = vector.broadcast %60 : vector<1x128xf32> to vector<128x128xf32>
    %62 = arith.addf %59, %61 : vector<128x128xf32>
    %c0_31 = arith.constant 0 : index
    %c0_32 = arith.constant 0 : index
    %63 = vector.load %arg9[%c0_31, %c0_32] : memref<128x128xf32, #tpu.memory_space<vmem>>, vector<128x128xf32>
    tpu.vector_store %arg9[%c0_31, %c0_32], %62 {strides = array<i32>} : memref<128x128xf32, #tpu.memory_space<vmem>>, vector<128x128xf32>,
    return
  }
}

</mosaic_0001>

<llo_original>
// kernel: mlp_forward.1
$region0: #{mlp_forward.1}
  #allocation0 [shape = 'u32[]', space=smem, size = 0x4, offset = 0x4, fixed_abs, tag = 'smem constant byte address 0x4 - core index']
  #allocation1 [shape = 'u32[72,128]{1,0:T(1,128)}', space=vmem, size = 0x9000, scoped, tag = 'internal scratch']
  %s0 = inlined_call_operand.vmem [shape: f32[128,32], index: 0, kind: input, shape index: {}]
  %s1 = inlined_call_operand.vmem [shape: bf16[32,128], index: 1, kind: input, shape index: {}]
  %s2 = inlined_call_operand.vmem [shape: f32[1,128], index: 2, kind: input, shape index: {}]
  %s3 = inlined_call_operand.vmem [shape: f32[1,128], index: 3, kind: input, shape index: {}]
  %s4 = inlined_call_operand.vmem [shape: bf16[128,128], index: 4, kind: input, shape index: {}]
  %s5 = inlined_call_operand.vmem [shape: f32[1,128], index: 5, kind: input, shape index: {}]
  %s6 = inlined_call_operand.vmem [shape: f32[1,128], index: 6, kind: input, shape index: {}]
  %s7 = inlined_call_operand.vmem [shape: bf16[128,128], index: 7, kind: input, shape index: {}]
  %s8 = inlined_call_operand.vmem [shape: f32[1,128], index: 8, kind: input, shape index: {}]
  %s9 = inlined_call_operand.vmem [shape: f32[128,128], index: 9, kind: output, shape index: {}]
  %s10 = sld [smem:[#allocation0]]
  $region46: #{mlp_forward.1} parent=0
    _
  %s12 = ssub.s32 1, %s10
  %s13 = scalar_select 0, %s12, %s10
  // Predicated region
  $region2: #{mlp_forward.1} parent=0 // pred_check
    _
  $region3: #{mlp_forward.1} parent=0 // pred_check_branch
    %15 = sbr.rel (0) target = $region5
  $region4: #{mlp_forward.1} parent=0 // pred_region
    _
  $region5: #{mlp_forward.1} parent=0 // pred_fallthru
    _
  // Predicated region
  $region6: #{mlp_forward.1} parent=0 // pred_check
    _
  $region7: #{mlp_forward.1} parent=0 // pred_check_branch
    %17 = sbr.rel (0) target = $region9
  $region8: #{mlp_forward.1} parent=0 // pred_region
    _
  $region9: #{mlp_forward.1} parent=0 // pred_fallthru
    _
  // Predicated region
  $region10: #{mlp_forward.1} parent=0 // pred_check
    _
  $region11: #{mlp_forward.1} parent=0 // pred_check_branch
    %19 = sbr.rel (0) target = $region13
  $region12: #{mlp_forward.1} parent=0 // pred_region
    _
  $region13: #{mlp_forward.1} parent=0 // pred_fallthru
    _
  // Predicated region
  $region14: #{mlp_forward.1} parent=0 // pred_check
    _
  $region15: #{mlp_forward.1} parent=0 // pred_check_branch
    %21 = sbr.rel (0) target = $region17
  $region16: #{mlp_forward.1} parent=0 // pred_region
    _
  $region17: #{mlp_forward.1} parent=0 // pred_fallthru
    _
  // Predicated region
  $region18: #{mlp_forward.1} parent=0 // pred_check
    _
  $region19: #{mlp_forward.1} parent=0 // pred_check_branch
    %23 = sbr.rel (0) target = $region21
  $region20: #{mlp_forward.1} parent=0 // pred_region
    _
  $region21: #{mlp_forward.1} parent=0 // pred_fallthru
    _
  // Predicated region
  $region22: #{mlp_forward.1} parent=0 // pred_check
    _
  $region23: #{mlp_forward.1} parent=0 // pred_check_branch
    %25 = sbr.rel (0) target = $region25
  $region24: #{mlp_forward.1} parent=0 // pred_region
    _
  $region25: #{mlp_forward.1} parent=0 // pred_fallthru
    _
  // Predicated region
  $region26: #{mlp_forward.1} parent=0 // pred_check
    _
  $region27: #{mlp_forward.1} parent=0 // pred_check_branch
    %27 = sbr.rel (0) target = $region29
  $region28: #{mlp_forward.1} parent=0 // pred_region
    _
  $region29: #{mlp_forward.1} parent=0 // pred_fallthru
    _
  // Predicated region
  $region30: #{mlp_forward.1} parent=0 // pred_check
    _
  $region31: #{mlp_forward.1} parent=0 // pred_check_branch
    %29 = sbr.rel (0) target = $region33
  $region32: #{mlp_forward.1} parent=0 // pred_region
    _
  $region33: #{mlp_forward.1} parent=0 // pred_fallthru
    _
  // Predicated region
  $region34: #{mlp_forward.1} parent=0 // pred_check
    _
  $region35: #{mlp_forward.1} parent=0 // pred_check_branch
    %31 = sbr.rel (0) target = $region37
  $region36: #{mlp_forward.1} parent=0 // pred_region
    _
  $region37: #{mlp_forward.1} parent=0 // pred_fallthru
    _
  %v33 = vld [vmem:[%s0] sm:$0xff]
  %v34 = vld [vmem:[%s0 + $0x8] sm:$0xff]
  %v35 = vld [vmem:[%s0 + $0x10] sm:$0xff]
  %v36 = vld [vmem:[%s0 + $0x18] sm:$0xff]
  %v37 = vld [vmem:[%s0 + $0x20] sm:$0xff]
  %v38 = vld [vmem:[%s0 + $0x28] sm:$0xff]
  %v39 = vld [vmem:[%s0 + $0x30] sm:$0xff]
  %v40 = vld [vmem:[%s0 + $0x38] sm:$0xff]
  %v41 = vld [vmem:[%s0 + $0x40] sm:$0xff]
  %v42 = vld [vmem:[%s0 + $0x48] sm:$0xff]
  %v43 = vld [vmem:[%s0 + $0x50] sm:$0xff]
  %v44 = vld [vmem:[%s0 + $0x58] sm:$0xff]
  %v45 = vld [vmem:[%s0 + $0x60] sm:$0xff]
  %v46 = vld [vmem:[%s0 + $0x68] sm:$0xff]
  %v47 = vld [vmem:[%s0 + $0x70] sm:$0xff]
  %v48 = vld [vmem:[%s0 + $0x78] sm:$0xff]
  %v49 = vpack.c.bf16 %v34, %v33
  %v50 = vpack.c.bf16 %v36, %v35
  %v51 = vpack.c.bf16 %v38, %v37
  %v52 = vpack.c.bf16 %v40, %v39
  %v53 = vpack.c.bf16 %v42, %v41
  %v54 = vpack.c.bf16 %v44, %v43
  %v55 = vpack.c.bf16 %v46, %v45
  %v56 = vpack.c.bf16 %v48, %v47
  %v57 = vld [vmem:[%s1] sm:$0xf]
  %v58 = vld [vmem:[%s1 + $0x4] sm:$0xf]
  %v59 = vld [vmem:[%s1 + $0x8] sm:$0xf]
  %v60 = vld [vmem:[%s1 + $0xc] sm:$0xf]
  %v65 = vunpack.c.l.b16 %v57
  %v66 = vunpack.c.l.b16 %v58
  %v67 = vunpack.c.l.b16 %v59
  %v68 = vunpack.c.l.b16 %v60
  %v69 = vpack.c.b16 %v66, %v65
  %v70 = vpack.c.b16 %v68, %v67
  %vm73 = vcmask 261120
  %v75 = vsel %vm73, %v49, 0
  %v78 = vsel %vm73, %v50, 0
  %v81 = vsel %vm73, %v51, 0
  %v84 = vsel %vm73, %v52, 0
  %v87 = vsel %vm73, %v53, 0
  %v90 = vsel %vm73, %v54, 0
  %v93 = vsel %vm73, %v55, 0
  %v96 = vsel %vm73, %v56, 0
  %98 = vmatpush.bf16.msra.mxu0 0
  %99 = vmatpush.bf16.msra.mxu0 0
  %100 = vmatpush.bf16.msra.mxu0 0
  %101 = vmatpush.bf16.msra.mxu0 0
  %102 = vmatpush.bf16.msra.mxu0 0
  %103 = vmatpush.bf16.msra.mxu0 0
  %104 = vmatpush.bf16.msra.mxu0 %v70
  %105 = vmatpush.bf16.msra.mxu0 %v69
  %106 = vmatmul.bf16.gmra.mxu0 %v75
  %v107 = vpop.f32.mrf.mxu0
  %v108 = vadd.f32 0.0, %v107
  %v109 = vpop.f32.mrf.mxu0
  %v110 = vadd.f32 0.0, %v109
  %111 = vmatmul.bf16.gmra.mxu0 %v78
  %v112 = vpop.f32.mrf.mxu0
  %v113 = vadd.f32 0.0, %v112
  %v114 = vpop.f32.mrf.mxu0
  %v115 = vadd.f32 0.0, %v114
  %116 = vmatmul.bf16.gmra.mxu0 %v81
  %v117 = vpop.f32.mrf.mxu0
  %v118 = vadd.f32 0.0, %v117
  %v119 = vpop.f32.mrf.mxu0
  %v120 = vadd.f32 0.0, %v119
  %121 = vmatmul.bf16.gmra.mxu0 %v84
  %v122 = vpop.f32.mrf.mxu0
  %v123 = vadd.f32 0.0, %v122
  %v124 = vpop.f32.mrf.mxu0
  %v125 = vadd.f32 0.0, %v124
  %126 = vmatmul.bf16.gmra.mxu0 %v87
  %v127 = vpop.f32.mrf.mxu0
  %v128 = vadd.f32 0.0, %v127
  %v129 = vpop.f32.mrf.mxu0
  %v130 = vadd.f32 0.0, %v129
  %131 = vmatmul.bf16.gmra.mxu0 %v90
  %v132 = vpop.f32.mrf.mxu0
  %v133 = vadd.f32 0.0, %v132
  %v134 = vpop.f32.mrf.mxu0
  %v135 = vadd.f32 0.0, %v134
  %136 = vmatmul.bf16.gmra.mxu0 %v93
  %v137 = vpop.f32.mrf.mxu0
  %v138 = vadd.f32 0.0, %v137
  %v139 = vpop.f32.mrf.mxu0
  %v140 = vadd.f32 0.0, %v139
  %141 = vmatmul.bf16.gmra.mxu0 %v96
  %v142 = vpop.f32.mrf.mxu0
  %v143 = vadd.f32 0.0, %v142
  %v144 = vpop.f32.mrf.mxu0
  %v145 = vadd.f32 0.0, %v144
  %146 = vdwg.mxu0
  %v147 = vld [vmem:[%s2] sm:$0x1]
  %v148 = vld [vmem:[%s3] sm:$0x1]
  %v149 = vadd.f32 %v108, %v110
  %v150 = vadd.f32 %v149, %v113
  %v151 = vadd.f32 %v150, %v115
  %v152 = vadd.f32 %v151, %v118
  %v153 = vadd.f32 %v152, %v120
  %v154 = vadd.f32 %v153, %v123
  %v155 = vadd.f32 %v154, %v125
  %v156 = vadd.f32 %v155, %v128
  %v157 = vadd.f32 %v156, %v130
  %v158 = vadd.f32 %v157, %v133
  %v159 = vadd.f32 %v158, %v135
  %v160 = vadd.f32 %v159, %v138
  %v161 = vadd.f32 %v160, %v140
  %v162 = vadd.f32 %v161, %v143
  %v163 = vadd.f32 %v162, %v145
  %v164 = vrot.slane %v163, 4
  %v165 = vadd.f32 %v163, %v164
  %v166 = vrot.slane %v165, 2
  %v167 = vadd.f32 %v165, %v166
  %v168 = vrot.slane %v167, 1
  %v169 = vadd.f32 %v167, %v168
  %v170 = vmul.f32 %v108, %v108
  %v171 = vmul.f32 %v110, %v110
  %v172 = vmul.f32 %v113, %v113
  %v173 = vmul.f32 %v115, %v115
  %v174 = vmul.f32 %v118, %v118
  %v175 = vmul.f32 %v120, %v120
  %v176 = vmul.f32 %v123, %v123
  %v177 = vmul.f32 %v125, %v125
  %v178 = vmul.f32 %v128, %v128
  %v179 = vmul.f32 %v130, %v130
  %v180 = vmul.f32 %v133, %v133
  %v181 = vmul.f32 %v135, %v135
  %v182 = vmul.f32 %v138, %v138
  %v183 = vmul.f32 %v140, %v140
  %v184 = vmul.f32 %v143, %v143
  %v185 = vmul.f32 %v145, %v145
  %v186 = vadd.f32 %v170, %v171
  %v187 = vadd.f32 %v186, %v172
  %v188 = vadd.f32 %v187, %v173
  %v189 = vadd.f32 %v188, %v174
  %v190 = vadd.f32 %v189, %v175
  %v191 = vadd.f32 %v190, %v176
  %v192 = vadd.f32 %v191, %v177
  %v193 = vadd.f32 %v192, %v178
  %v194 = vadd.f32 %v193, %v179
  %v195 = vadd.f32 %v194, %v180
  %v196 = vadd.f32 %v195, %v181
  %v197 = vadd.f32 %v196, %v182
  %v198 = vadd.f32 %v197, %v183
  %v199 = vadd.f32 %v198, %v184
  %v200 = vadd.f32 %v199, %v185
  %v201 = vrot.slane %v200, 4
  %v202 = vadd.f32 %v200, %v201
  %v203 = vrot.slane %v202, 2
  %v204 = vadd.f32 %v202, %v203
  %v205 = vrot.slane %v204, 1
  %v206 = vadd.f32 %v204, %v205
  %v207 = vmul.f32 %v169, 0.0078125
  %v208 = vmul.f32 %v206, 0.0078125
  %v209 = vmul.f32 %v207, %v207
  %v210 = vsub.f32 %v208, %v209
  %v211 = vadd.f32 %v210, 1e-05
  %v212 = vrsqrt.pop %v211
  %v213 = vmul.f32 %v212, %v211
  %v214 = vmul.f32 %v213, %v212
  %v215 = vmul.f32 0.5, %v214
  %v216 = vsub.f32 1.5, %v215
  %v217 = vmul.f32 %v212, %v216
  %vm218 = vweird.f32 %v211
  %vm219 = vweird.f32 %v212
  %vm220 = vmor %vm218, %vm219
  %v221 = vsel %vm220, %v212, %v217
  %v222 = vmul.f32 %v147, %v221
  %v223 = vmul.f32 %v207, %v222
  %v224 = vsub.f32 %v148, %v223
  %v226 = vperm.slane %v222, 0
  %v228 = vmul.f32 %v108, %v226
  %v229 = vmul.f32 %v110, %v226
  %v230 = vmul.f32 %v113, %v226
  %v231 = vmul.f32 %v115, %v226
  %v232 = vmul.f32 %v118, %v226
  %v233 = vmul.f32 %v120, %v226
  %v234 = vmul.f32 %v123, %v226
  %v235 = vmul.f32 %v125, %v226
  %v236 = vmul.f32 %v128, %v226
  %v237 = vmul.f32 %v130, %v226
  %v238 = vmul.f32 %v133, %v226
  %v239 = vmul.f32 %v135, %v226
  %v240 = vmul.f32 %v138, %v226
  %v241 = vmul.f32 %v140, %v226
  %v242 = vmul.f32 %v143, %v226
  %v243 = vmul.f32 %v145, %v226
  %v245 = vperm.slane %v224, 0
  %v247 = vadd.f32 %v228, %v245
  %v248 = vadd.f32 %v229, %v245
  %v249 = vadd.f32 %v230, %v245
  %v250 = vadd.f32 %v231, %v245
  %v251 = vadd.f32 %v232, %v245
  %v252 = vadd.f32 %v233, %v245
  %v253 = vadd.f32 %v234, %v245
  %v254 = vadd.f32 %v235, %v245
  %v255 = vadd.f32 %v236, %v245
  %v256 = vadd.f32 %v237, %v245
  %v257 = vadd.f32 %v238, %v245
  %v258 = vadd.f32 %v239, %v245
  %v259 = vadd.f32 %v240, %v245
  %v260 = vadd.f32 %v241, %v245
  %v261 = vadd.f32 %v242, %v245
  %v262 = vadd.f32 %v243, %v245
  %v263 = vmax.f32 %v247, 0.0
  %v264 = vmax.f32 %v248, 0.0
  %v265 = vmax.f32 %v249, 0.0
  %v266 = vmax.f32 %v250, 0.0
  %v267 = vmax.f32 %v251, 0.0
  %v268 = vmax.f32 %v252, 0.0
  %v269 = vmax.f32 %v253, 0.0
  %v270 = vmax.f32 %v254, 0.0
  %v271 = vmax.f32 %v255, 0.0
  %v272 = vmax.f32 %v256, 0.0
  %v273 = vmax.f32 %v257, 0.0
  %v274 = vmax.f32 %v258, 0.0
  %v275 = vmax.f32 %v259, 0.0
  %v276 = vmax.f32 %v260, 0.0
  %v277 = vmax.f32 %v261, 0.0
  %v278 = vmax.f32 %v262, 0.0
  %v279 = vpack.c.bf16 %v264, %v263
  %v280 = vpack.c.bf16 %v266, %v265
  %v281 = vpack.c.bf16 %v268, %v267
  %v282 = vpack.c.bf16 %v270, %v269
  %v283 = vpack.c.bf16 %v272, %v271
  %v284 = vpack.c.bf16 %v274, %v273
  %v285 = vpack.c.bf16 %v276, %v275
  %v286 = vpack.c.bf16 %v278, %v277
  %v287 = vld [vmem:[%s4] sm:$0xf]
  %v288 = vld [vmem:[%s4 + $0x4] sm:$0xf]
  %v289 = vld [vmem:[%s4 + $0x8] sm:$0xf]
  %v290 = vld [vmem:[%s4 + $0xc] sm:$0xf]
  %v291 = vld [vmem:[%s4 + $0x10] sm:$0xf]
  %v292 = vld [vmem:[%s4 + $0x14] sm:$0xf]
  %v293 = vld [vmem:[%s4 + $0x18] sm:$0xf]
  %v294 = vld [vmem:[%s4 + $0x1c] sm:$0xf]
  %v295 = vld [vmem:[%s4 + $0x20] sm:$0xf]
  %v296 = vld [vmem:[%s4 + $0x24] sm:$0xf]
  %v297 = vld [vmem:[%s4 + $0x28] sm:$0xf]
  %v298 = vld [vmem:[%s4 + $0x2c] sm:$0xf]
  %v299 = vld [vmem:[%s4 + $0x30] sm:$0xf]
  %v300 = vld [vmem:[%s4 + $0x34] sm:$0xf]
  %v301 = vld [vmem:[%s4 + $0x38] sm:$0xf]
  %v302 = vld [vmem:[%s4 + $0x3c] sm:$0xf]
  %v319 = vunpack.c.l.b16 %v287
  %v320 = vunpack.c.l.b16 %v288
  %v321 = vunpack.c.l.b16 %v289
  %v322 = vunpack.c.l.b16 %v290
  %v323 = vunpack.c.l.b16 %v291
  %v324 = vunpack.c.l.b16 %v292
  %v325 = vunpack.c.l.b16 %v293
  %v326 = vunpack.c.l.b16 %v294
  %v327 = vunpack.c.l.b16 %v295
  %v328 = vunpack.c.l.b16 %v296
  %v329 = vunpack.c.l.b16 %v297
  %v330 = vunpack.c.l.b16 %v298
  %v331 = vunpack.c.l.b16 %v299
  %v332 = vunpack.c.l.b16 %v300
  %v333 = vunpack.c.l.b16 %v301
  %v334 = vunpack.c.l.b16 %v302
  %v335 = vpack.c.b16 %v320, %v319
  %v336 = vpack.c.b16 %v322, %v321
  %v337 = vpack.c.b16 %v324, %v323
  %v338 = vpack.c.b16 %v326, %v325
  %v339 = vpack.c.b16 %v328, %v327
  %v340 = vpack.c.b16 %v330, %v329
  %v341 = vpack.c.b16 %v332, %v331
  %v342 = vpack.c.b16 %v334, %v333
  %351 = vmatpush.bf16.msra.mxu0 %v342
  %352 = vmatpush.bf16.msra.mxu0 %v341
  %353 = vmatpush.bf16.msra.mxu0 %v340
  %354 = vmatpush.bf16.msra.mxu0 %v339
  %355 = vmatpush.bf16.msra.mxu0 %v338
  %356 = vmatpush.bf16.msra.mxu0 %v337
  %357 = vmatpush.bf16.msra.mxu0 %v336
  %358 = vmatpush.bf16.msra.mxu0 %v335
  %359 = vmatmul.bf16.gmra.mxu0 %v279
  %v360 = vpop.f32.mrf.mxu0
  %v361 = vadd.f32 0.0, %v360
  %v362 = vpop.f32.mrf.mxu0
  %v363 = vadd.f32 0.0, %v362
  %364 = vmatmul.bf16.gmra.mxu0 %v280
  %v365 = vpop.f32.mrf.mxu0
  %v366 = vadd.f32 0.0, %v365
  %v367 = vpop.f32.mrf.mxu0
  %v368 = vadd.f32 0.0, %v367
  %369 = vmatmul.bf16.gmra.mxu0 %v281
  %v370 = vpop.f32.mrf.mxu0
  %v371 = vadd.f32 0.0, %v370
  %v372 = vpop.f32.mrf.mxu0
  %v373 = vadd.f32 0.0, %v372
  %374 = vmatmul.bf16.gmra.mxu0 %v282
  %v375 = vpop.f32.mrf.mxu0
  %v376 = vadd.f32 0.0, %v375
  %v377 = vpop.f32.mrf.mxu0
  %v378 = vadd.f32 0.0, %v377
  %379 = vmatmul.bf16.gmra.mxu0 %v283
  %v380 = vpop.f32.mrf.mxu0
  %v381 = vadd.f32 0.0, %v380
  %v382 = vpop.f32.mrf.mxu0
  %v383 = vadd.f32 0.0, %v382
  %384 = vmatmul.bf16.gmra.mxu0 %v284
  %v385 = vpop.f32.mrf.mxu0
  %v386 = vadd.f32 0.0, %v385
  %v387 = vpop.f32.mrf.mxu0
  %v388 = vadd.f32 0.0, %v387
  %389 = vmatmul.bf16.gmra.mxu0 %v285
  %v390 = vpop.f32.mrf.mxu0
  %v391 = vadd.f32 0.0, %v390
  %v392 = vpop.f32.mrf.mxu0
  %v393 = vadd.f32 0.0, %v392
  %394 = vmatmul.bf16.gmra.mxu0 %v286
  %v395 = vpop.f32.mrf.mxu0
  %v396 = vadd.f32 0.0, %v395
  %v397 = vpop.f32.mrf.mxu0
  %v398 = vadd.f32 0.0, %v397
  %399 = vdwg.mxu0
  %v400 = vld [vmem:[%s5] sm:$0x1]
  %v401 = vld [vmem:[%s6] sm:$0x1]
  %v402 = vadd.f32 %v361, %v363
  %v403 = vadd.f32 %v402, %v366
  %v404 = vadd.f32 %v403, %v368
  %v405 = vadd.f32 %v404, %v371
  %v406 = vadd.f32 %v405, %v373
  %v407 = vadd.f32 %v406, %v376
  %v408 = vadd.f32 %v407, %v378
  %v409 = vadd.f32 %v408, %v381
  %v410 = vadd.f32 %v409, %v383
  %v411 = vadd.f32 %v410, %v386
  %v412 = vadd.f32 %v411, %v388
  %v413 = vadd.f32 %v412, %v391
  %v414 = vadd.f32 %v413, %v393
  %v415 = vadd.f32 %v414, %v396
  %v416 = vadd.f32 %v415, %v398
  %v417 = vrot.slane %v416, 4
  %v418 = vadd.f32 %v416, %v417
  %v419 = vrot.slane %v418, 2
  %v420 = vadd.f32 %v418, %v419
  %v421 = vrot.slane %v420, 1
  %v422 = vadd.f32 %v420, %v421
  %v423 = vmul.f32 %v361, %v361
  %v424 = vmul.f32 %v363, %v363
  %v425 = vmul.f32 %v366, %v366
  %v426 = vmul.f32 %v368, %v368
  %v427 = vmul.f32 %v371, %v371
  %v428 = vmul.f32 %v373, %v373
  %v429 = vmul.f32 %v376, %v376
  %v430 = vmul.f32 %v378, %v378
  %v431 = vmul.f32 %v381, %v381
  %v432 = vmul.f32 %v383, %v383
  %v433 = vmul.f32 %v386, %v386
  %v434 = vmul.f32 %v388, %v388
  %v435 = vmul.f32 %v391, %v391
  %v436 = vmul.f32 %v393, %v393
  %v437 = vmul.f32 %v396, %v396
  %v438 = vmul.f32 %v398, %v398
  %v439 = vadd.f32 %v423, %v424
  %v440 = vadd.f32 %v439, %v425
  %v441 = vadd.f32 %v440, %v426
  %v442 = vadd.f32 %v441, %v427
  %v443 = vadd.f32 %v442, %v428
  %v444 = vadd.f32 %v443, %v429
  %v445 = vadd.f32 %v444, %v430
  %v446 = vadd.f32 %v445, %v431
  %v447 = vadd.f32 %v446, %v432
  %v448 = vadd.f32 %v447, %v433
  %v449 = vadd.f32 %v448, %v434
  %v450 = vadd.f32 %v449, %v435
  %v451 = vadd.f32 %v450, %v436
  %v452 = vadd.f32 %v451, %v437
  %v453 = vadd.f32 %v452, %v438
  %v454 = vrot.slane %v453, 4
  %v455 = vadd.f32 %v453, %v454
  %v456 = vrot.slane %v455, 2
  %v457 = vadd.f32 %v455, %v456
  %v458 = vrot.slane %v457, 1
  %v459 = vadd.f32 %v457, %v458
  %v460 = vmul.f32 %v422, 0.0078125
  %v461 = vmul.f32 %v459, 0.0078125
  %v462 = vmul.f32 %v460, %v460
  %v463 = vsub.f32 %v461, %v462
  %v464 = vadd.f32 %v463, 1e-05
  %v465 = vrsqrt.pop %v464
  %v466 = vmul.f32 %v465, %v464
  %v467 = vmul.f32 %v466, %v465
  %v468 = vmul.f32 0.5, %v467
  %v469 = vsub.f32 1.5, %v468
  %v470 = vmul.f32 %v465, %v469
  %vm471 = vweird.f32 %v464
  %vm472 = vweird.f32 %v465
  %vm473 = vmor %vm471, %vm472
  %v474 = vsel %vm473, %v465, %v470
  %v475 = vmul.f32 %v400, %v474
  %v476 = vmul.f32 %v460, %v475
  %v477 = vsub.f32 %v401, %v476
  %v479 = vperm.slane %v475, 0
  %v481 = vmul.f32 %v361, %v479
  %v482 = vmul.f32 %v363, %v479
  %v483 = vmul.f32 %v366, %v479
  %v484 = vmul.f32 %v368, %v479
  %v485 = vmul.f32 %v371, %v479
  %v486 = vmul.f32 %v373, %v479
  %v487 = vmul.f32 %v376, %v479
  %v488 = vmul.f32 %v378, %v479
  %v489 = vmul.f32 %v381, %v479
  %v490 = vmul.f32 %v383, %v479
  %v491 = vmul.f32 %v386, %v479
  %v492 = vmul.f32 %v388, %v479
  %v493 = vmul.f32 %v391, %v479
  %v494 = vmul.f32 %v393, %v479
  %v495 = vmul.f32 %v396, %v479
  %v496 = vmul.f32 %v398, %v479
  %v498 = vperm.slane %v477, 0
  %v500 = vadd.f32 %v481, %v498
  %v501 = vadd.f32 %v482, %v498
  %v502 = vadd.f32 %v483, %v498
  %v503 = vadd.f32 %v484, %v498
  %v504 = vadd.f32 %v485, %v498
  %v505 = vadd.f32 %v486, %v498
  %v506 = vadd.f32 %v487, %v498
  %v507 = vadd.f32 %v488, %v498
  %v508 = vadd.f32 %v489, %v498
  %v509 = vadd.f32 %v490, %v498
  %v510 = vadd.f32 %v491, %v498
  %v511 = vadd.f32 %v492, %v498
  %v512 = vadd.f32 %v493, %v498
  %v513 = vadd.f32 %v494, %v498
  %v514 = vadd.f32 %v495, %v498
  %v515 = vadd.f32 %v496, %v498
  %v516 = vmax.f32 %v500, 0.0
  %v517 = vmax.f32 %v501, 0.0
  %v518 = vmax.f32 %v502, 0.0
  %v519 = vmax.f32 %v503, 0.0
  %v520 = vmax.f32 %v504, 0.0
  %v521 = vmax.f32 %v505, 0.0
  %v522 = vmax.f32 %v506, 0.0
  %v523 = vmax.f32 %v507, 0.0
  %v524 = vmax.f32 %v508, 0.0
  %v525 = vmax.f32 %v509, 0.0
  %v526 = vmax.f32 %v510, 0.0
  %v527 = vmax.f32 %v511, 0.0
  %v528 = vmax.f32 %v512, 0.0
  %v529 = vmax.f32 %v513, 0.0
  %v530 = vmax.f32 %v514, 0.0
  %v531 = vmax.f32 %v515, 0.0
  %v532 = vpack.c.bf16 %v517, %v516
  %v533 = vpack.c.bf16 %v519, %v518
  %v534 = vpack.c.bf16 %v521, %v520
  %v535 = vpack.c.bf16 %v523, %v522
  %v536 = vpack.c.bf16 %v525, %v524
  %v537 = vpack.c.bf16 %v527, %v526
  %v538 = vpack.c.bf16 %v529, %v528
  %v539 = vpack.c.bf16 %v531, %v530
  %v540 = vld [vmem:[%s7] sm:$0xf]
  %v541 = vld [vmem:[%s7 + $0x4] sm:$0xf]
  %v542 = vld [vmem:[%s7 + $0x8] sm:$0xf]
  %v543 = vld [vmem:[%s7 + $0xc] sm:$0xf]
  %v544 = vld [vmem:[%s7 + $0x10] sm:$0xf]
  %v545 = vld [vmem:[%s7 + $0x14] sm:$0xf]
  %v546 = vld [vmem:[%s7 + $0x18] sm:$0xf]
  %v547 = vld [vmem:[%s7 + $0x1c] sm:$0xf]
  %v548 = vld [vmem:[%s7 + $0x20] sm:$0xf]
  %v549 = vld [vmem:[%s7 + $0x24] sm:$0xf]
  %v550 = vld [vmem:[%s7 + $0x28] sm:$0xf]
  %v551 = vld [vmem:[%s7 + $0x2c] sm:$0xf]
  %v552 = vld [vmem:[%s7 + $0x30] sm:$0xf]
  %v553 = vld [vmem:[%s7 + $0x34] sm:$0xf]
  %v554 = vld [vmem:[%s7 + $0x38] sm:$0xf]
  %v555 = vld [vmem:[%s7 + $0x3c] sm:$0xf]
  %v556 = vld [vmem:[%s8] sm:$0x1]
  %v558 = vperm.slane %v556, 0
  %v576 = vunpack.c.l.b16 %v540
  %v577 = vunpack.c.l.b16 %v541
  %v578 = vunpack.c.l.b16 %v542
  %v579 = vunpack.c.l.b16 %v543
  %v580 = vunpack.c.l.b16 %v544
  %v581 = vunpack.c.l.b16 %v545
  %v582 = vunpack.c.l.b16 %v546
  %v583 = vunpack.c.l.b16 %v547
  %v584 = vunpack.c.l.b16 %v548
  %v585 = vunpack.c.l.b16 %v549
  %v586 = vunpack.c.l.b16 %v550
  %v587 = vunpack.c.l.b16 %v551
  %v588 = vunpack.c.l.b16 %v552
  %v589 = vunpack.c.l.b16 %v553
  %v590 = vunpack.c.l.b16 %v554
  %v591 = vunpack.c.l.b16 %v555
  %v592 = vpack.c.b16 %v577, %v576
  %v593 = vpack.c.b16 %v579, %v578
  %v594 = vpack.c.b16 %v581, %v580
  %v595 = vpack.c.b16 %v583, %v582
  %v596 = vpack.c.b16 %v585, %v584
  %v597 = vpack.c.b16 %v587, %v586
  %v598 = vpack.c.b16 %v589, %v588
  %v599 = vpack.c.b16 %v591, %v590
  %608 = vmatpush.bf16.msra.mxu0 %v599
  %609 = vmatpush.bf16.msra.mxu0 %v598
  %610 = vmatpush.bf16.msra.mxu0 %v597
  %611 = vmatpush.bf16.msra.mxu0 %v596
  %612 = vmatpush.bf16.msra.mxu0 %v595
  %613 = vmatpush.bf16.msra.mxu0 %v594
  %614 = vmatpush.bf16.msra.mxu0 %v593
  %615 = vmatpush.bf16.msra.mxu0 %v592
  %616 = vmatmul.bf16.gmra.mxu0 %v532
  %v617 = vpop.f32.mrf.mxu0
  %v618 = vadd.f32 %v558, %v617
  %v619 = vpop.f32.mrf.mxu0
  %v620 = vadd.f32 %v558, %v619
  %621 = vmatmul.bf16.gmra.mxu0 %v533
  %v622 = vpop.f32.mrf.mxu0
  %v623 = vadd.f32 %v558, %v622
  %v624 = vpop.f32.mrf.mxu0
  %v625 = vadd.f32 %v558, %v624
  %626 = vmatmul.bf16.gmra.mxu0 %v534
  %v627 = vpop.f32.mrf.mxu0
  %v628 = vadd.f32 %v558, %v627
  %v629 = vpop.f32.mrf.mxu0
  %v630 = vadd.f32 %v558, %v629
  %631 = vmatmul.bf16.gmra.mxu0 %v535
  %v632 = vpop.f32.mrf.mxu0
  %v633 = vadd.f32 %v558, %v632
  %v634 = vpop.f32.mrf.mxu0
  %v635 = vadd.f32 %v558, %v634
  %636 = vmatmul.bf16.gmra.mxu0 %v536
  %v637 = vpop.f32.mrf.mxu0
  %v638 = vadd.f32 %v558, %v637
  %v639 = vpop.f32.mrf.mxu0
  %v640 = vadd.f32 %v558, %v639
  %641 = vmatmul.bf16.gmra.mxu0 %v537
  %v642 = vpop.f32.mrf.mxu0
  %v643 = vadd.f32 %v558, %v642
  %v644 = vpop.f32.mrf.mxu0
  %v645 = vadd.f32 %v558, %v644
  %646 = vmatmul.bf16.gmra.mxu0 %v538
  %v647 = vpop.f32.mrf.mxu0
  %v648 = vadd.f32 %v558, %v647
  %v649 = vpop.f32.mrf.mxu0
  %v650 = vadd.f32 %v558, %v649
  %651 = vmatmul.bf16.gmra.mxu0 %v539
  %v652 = vpop.f32.mrf.mxu0
  %v653 = vadd.f32 %v558, %v652
  %v654 = vpop.f32.mrf.mxu0
  %v655 = vadd.f32 %v558, %v654
  %656 = vdwg.mxu0
  %657 = vst [vmem:[%s9] sm:$0xff] %v618
  %658 = vst [vmem:[%s9 + $0x8] sm:$0xff] %v620
  %659 = vst [vmem:[%s9 + $0x10] sm:$0xff] %v623
  %660 = vst [vmem:[%s9 + $0x18] sm:$0xff] %v625
  %661 = vst [vmem:[%s9 + $0x20] sm:$0xff] %v628
  %662 = vst [vmem:[%s9 + $0x28] sm:$0xff] %v630
  %663 = vst [vmem:[%s9 + $0x30] sm:$0xff] %v633
  %664 = vst [vmem:[%s9 + $0x38] sm:$0xff] %v635
  %665 = vst [vmem:[%s9 + $0x40] sm:$0xff] %v638
  %666 = vst [vmem:[%s9 + $0x48] sm:$0xff] %v640
  %667 = vst [vmem:[%s9 + $0x50] sm:$0xff] %v643
  %668 = vst [vmem:[%s9 + $0x58] sm:$0xff] %v645
  %669 = vst [vmem:[%s9 + $0x60] sm:$0xff] %v648
  %670 = vst [vmem:[%s9 + $0x68] sm:$0xff] %v650
  %671 = vst [vmem:[%s9 + $0x70] sm:$0xff] %v653
  %672 = vst [vmem:[%s9 + $0x78] sm:$0xff] %v655
  // Predicated region
  $region38: #{mlp_forward.1} parent=0 // pred_check
    _
  $region39: #{mlp_forward.1} parent=0 // pred_check_branch
    %674 = sbr.rel (0) target = $region41
  $region40: #{mlp_forward.1} parent=0 // pred_region
    _
  $region41: #{mlp_forward.1} parent=0 // pred_fallthru
    _
  // Predicated region
  $region42: #{mlp_forward.1} parent=0 // pred_check
    _
  $region43: #{mlp_forward.1} parent=0 // pred_check_branch
    %676 = sbr.rel (0) target = $region45
  $region44: #{mlp_forward.1} parent=0 // pred_region
    _
  $region45: #{mlp_forward.1} parent=0 // pred_fallthru
    _

</llo_original>
